<compile_context>
chip_gen: v7x
topology: tpu7x:2x2x1
jax: 0.10.0
libtpu: 0.0.40
codegen_flags: <defaults>
</compile_context>

<pallas_src>
import functools
import math

import jax
import jax.numpy as jnp
from jax.experimental import pallas as pl
from jax.experimental.pallas import tpu as pltpu

NEG_INF = -1e30                      # finite large-negative keeps the online softmax NaN-free
VMEM_LIMIT = 48 * 1024 * 1024        # < v7x's 64 MiB physical VMEM; plenty for these tiles


def _round_up(x, m):
    return ((x + m - 1) // m) * m


# ---------------------------------------------------------------------------
# Kernel A: tiled fused linear  y = x @ W_t + b   (x, W_t in bf16; f32 accumulate)
# ---------------------------------------------------------------------------
def linear_kernel(x_ref, w_ref, b_ref, o_ref):
    acc = jnp.dot(x_ref[...], w_ref[...], preferred_element_type=jnp.float32)
    o_ref[...] = (acc + b_ref[...]).astype(o_ref.dtype)


def fused_linear(x2d, w_t, b, *, out_dtype=None, block_rows=512, block_cols=512):
    M, K = x2d.shape
    _, N = w_t.shape
    if out_dtype is None:
        out_dtype = x2d.dtype

    # Row tiling (pad M so we never fall back to one giant block).
    bm = _round_up(min(block_rows, _round_up(M, 8)), 8)
    M_pad = _round_up(M, bm)
    if M_pad != M:
        x2d = jnp.pad(x2d, ((0, M_pad - M), (0, 0)))
    # Column tiling (lane-dense multiples of 128 when possible, else full N).
    bn = block_cols if N % block_cols == 0 else N
    # TODO(synk): for very large K add a K-tiled accumulator variant; K stays resident here.

    out = pl.pallas_call(
        linear_kernel,
        out_shape=jax.ShapeDtypeStruct((M_pad, N), out_dtype),
        grid_spec=pltpu.PrefetchScalarGridSpec(
            num_scalar_prefetch=0,
            grid=(M_pad // bm, N // bn),
            in_specs=[
                pl.BlockSpec((bm, K), lambda i, j: (i, 0)),   # activations (bf16 row tile)
                pl.BlockSpec((K, bn), lambda i, j: (0, j)),   # pre-transposed weight tile (bf16)
                pl.BlockSpec((1, bn), lambda i, j: (0, j)),   # bias tile (f32)
            ],
            out_specs=pl.BlockSpec((bm, bn), lambda i, j: (i, j)),
        ),
        compiler_params=pltpu.CompilerParams(
            dimension_semantics=("parallel", "parallel"),
            vmem_limit_bytes=VMEM_LIMIT,
        ),
    )(x2d, w_t, b)
    return out[:M] if M_pad != M else out


# ---------------------------------------------------------------------------
# Kernel B: causal flash attention (online softmax), shared by both layouts
# ---------------------------------------------------------------------------
def flash_attn_kernel(q_ref, k_ref, v_ref, o_ref, m_scr, l_scr, acc_scr, *,
                      block_q, block_k, q_axis, kv_axis):
    qi = pl.program_id(q_axis)
    ki = pl.program_id(kv_axis)
    q_start = qi * block_q
    k_start = ki * block_k

    @pl.when(ki == 0)
    def _init():
        m_scr[...] = jnp.full_like(m_scr, NEG_INF)
        l_scr[...] = jnp.zeros_like(l_scr)
        acc_scr[...] = jnp.zeros_like(acc_scr)

    def _update(apply_mask):
        q = q_ref[0]                                   # (block_q, D) bf16, 1/sqrt(D) pre-folded
        k = k_ref[0]                                   # (block_k, D) bf16
        v = v_ref[0]                                   # (block_k, D) bf16
        s = jax.lax.dot_general(q, k, (((1,), (1,)), ((), ())),
                                preferred_element_type=jnp.float32)   # (block_q, block_k) f32
        if apply_mask:                                 # only on diagonal-straddling blocks
            row = q_start + jax.lax.broadcasted_iota(jnp.int32, s.shape, 0)
            col = k_start + jax.lax.broadcasted_iota(jnp.int32, s.shape, 1)
            s = jnp.where(col > row, NEG_INF, s)
        m_prev = m_scr[...]
        m_new = jnp.maximum(m_prev, jnp.max(s, axis=-1, keepdims=True))
        alpha = jnp.exp(m_prev - m_new)
        p = jnp.exp(s - m_new)
        l_scr[...] = alpha * l_scr[...] + jnp.sum(p, axis=-1, keepdims=True)
        acc_scr[...] = alpha * acc_scr[...] + jnp.dot(
            p.astype(v.dtype), v, preferred_element_type=jnp.float32)  # bf16 p into the MXU
        m_scr[...] = m_new

    visible = k_start <= q_start + (block_q - 1)            # block has >= 1 unmasked entry
    interior = k_start + (block_k - 1) <= q_start            # block is fully unmasked

    @pl.when(interior)
    def _fast():
        _update(apply_mask=False)

    @pl.when(jnp.logical_and(visible, jnp.logical_not(interior)))
    def _masked():
        _update(apply_mask=True)

    @pl.when(ki == pl.num_programs(kv_axis) - 1)
    def _finalize():
        inv_l = pl.reciprocal(l_scr[...], approx=True)       # EUP slot, ~free
        o_ref[0] = (acc_scr[...] * inv_l).astype(o_ref.dtype)


def _plan_blocks(S, block_q, block_k):
    s8 = _round_up(S, 8)
    blk_q = _round_up(min(block_q, s8), 8)
    blk_k = _round_up(min(block_k, s8), 8)
    S_pad = _round_up(S, max(blk_q, blk_k))
    assert S_pad % blk_q == 0 and S_pad % blk_k == 0, (blk_q, blk_k, S_pad)
    return blk_q, blk_k, S_pad


def _clamp_kv(qi, ki, blk_q, blk_k):
    # Clamp kv block index to the last causally-visible block so Pallas elides the DMA
    # of fully-masked blocks (their index equals the previous step's index).
    return jnp.minimum(ki, (qi * blk_q + blk_q - 1) // blk_k)


def _attn_scratch(blk_q, D):
    return [pltpu.VMEM((blk_q, 1), jnp.float32),   # running max
            pltpu.VMEM((blk_q, 1), jnp.float32),   # running sum
            pltpu.VMEM((blk_q, D), jnp.float32)]   # output accumulator


def flash_attention(q, k, v, *, block_q=256, block_k=256):
    """Fallback layout: q/k/v are (B*H, S, D)."""
    G, S, D = q.shape
    blk_q, blk_k, S_pad = _plan_blocks(S, block_q, block_k)
    if S_pad != S:
        pad = ((0, 0), (0, S_pad - S), (0, 0))
        q, k, v = jnp.pad(q, pad), jnp.pad(k, pad), jnp.pad(v, pad)
    kernel = functools.partial(flash_attn_kernel, block_q=blk_q, block_k=blk_k,
                               q_axis=1, kv_axis=2)
    out = pl.pallas_call(
        kernel,
        out_shape=jax.ShapeDtypeStruct((G, S_pad, D), q.dtype),
        grid_spec=pltpu.PrefetchScalarGridSpec(
            num_scalar_prefetch=0,
            grid=(G, S_pad // blk_q, S_pad // blk_k),
            in_specs=[
                pl.BlockSpec((1, blk_q, D), lambda g, qi, ki: (g, qi, 0)),
                pl.BlockSpec((1, blk_k, D),
                             lambda g, qi, ki: (g, _clamp_kv(qi, ki, blk_q, blk_k), 0)),
                pl.BlockSpec((1, blk_k, D),
                             lambda g, qi, ki: (g, _clamp_kv(qi, ki, blk_q, blk_k), 0)),
            ],
            out_specs=pl.BlockSpec((1, blk_q, D), lambda g, qi, ki: (g, qi, 0)),
            scratch_shapes=_attn_scratch(blk_q, D),
        ),
        compiler_params=pltpu.CompilerParams(
            dimension_semantics=("parallel", "parallel", "arbitrary"),
            vmem_limit_bytes=VMEM_LIMIT,
        ),
    )(q, k, v)
    return out if S_pad == S else out[:, :S]


def flash_attention_packed(qkv, B, S, H, D, *, block_q=256, block_k=256):
    """No-transpose layout (requires D % 128 == 0): qkv is (B, S, 3*H*D) with columns
    [Q heads | K heads | V heads]; heads are selected purely via BlockSpec index maps and
    the output lands directly in (B, S, H*D) layout."""
    E = H * D
    blk_q, blk_k, S_pad = _plan_blocks(S, block_q, block_k)
    if S_pad != S:
        qkv = jnp.pad(qkv, ((0, 0), (0, S_pad - S), (0, 0)))
    kernel = functools.partial(flash_attn_kernel, block_q=blk_q, block_k=blk_k,
                               q_axis=2, kv_axis=3)

    def q_map(b, h, qi, ki):
        return (b, qi, h)

    def k_map(b, h, qi, ki):
        return (b, _clamp_kv(qi, ki, blk_q, blk_k), H + h)

    def v_map(b, h, qi, ki):
        return (b, _clamp_kv(qi, ki, blk_q, blk_k), 2 * H + h)

    out = pl.pallas_call(
        kernel,
        out_shape=jax.ShapeDtypeStruct((B, S_pad, E), qkv.dtype),
        grid_spec=pltpu.PrefetchScalarGridSpec(
            num_scalar_prefetch=0,
            grid=(B, H, S_pad // blk_q, S_pad // blk_k),
            in_specs=[
                pl.BlockSpec((1, blk_q, D), q_map),
                pl.BlockSpec((1, blk_k, D), k_map),
                pl.BlockSpec((1, blk_k, D), v_map),
            ],
            out_specs=pl.BlockSpec((1, blk_q, D), lambda b, h, qi, ki: (b, qi, h)),
            scratch_shapes=_attn_scratch(blk_q, D),
        ),
        compiler_params=pltpu.CompilerParams(
            dimension_semantics=("parallel", "parallel", "parallel", "arbitrary"),
            vmem_limit_bytes=VMEM_LIMIT,
        ),
    )(qkv, qkv, qkv)
    return out if S_pad == S else out[:, :S]


# ---------------------------------------------------------------------------
# Module wrapper (fused QKV projection -> flash attention -> output projection)
# ---------------------------------------------------------------------------
def multi_head_attention(x, wq, wk, wv, wo, bq, bk, bv, bo, *, num_heads,
                         block_q=256, block_k=256):
    B, S, E = x.shape
    assert E % num_heads == 0, "embedding_dim must be divisible by num_heads"
    H = num_heads
    D = E // H
    scale = 1.0 / math.sqrt(D)

    # Weight plumbing: fuse QKV, pre-transpose, fold 1/sqrt(D) into Q, cast to bf16.
    w_qkv_t = jnp.concatenate([wq * scale, wk, wv], axis=0).T.astype(jnp.bfloat16)  # (E, 3E)
    b_qkv = jnp.concatenate([bq * scale, bk, bv], axis=1).astype(jnp.float32)       # (1, 3E)
    wo_t = wo.T.astype(jnp.bfloat16)                                                # (E, E)

    # 1) Fused QKV projection over all B*S rows (bf16 in, f32 accumulate, bf16 out).
    x2d = x.reshape(B * S, E).astype(jnp.bfloat16)
    qkv = fused_linear(x2d, w_qkv_t, b_qkv, out_dtype=jnp.bfloat16)                 # (B*S, 3E)

    if D % 128 == 0:
        # 2a) Lane-dense path: no head split/merge transposes at all; heads picked by
        #     BlockSpec index maps and the output lands back in (B, S, E).
        attn2d = flash_attention_packed(qkv.reshape(B, S, 3 * E), B, S, H, D,
                                        block_q=block_q, block_k=block_k).reshape(B * S, E)
    else:
        # 2b) Fallback for D < 128 (e.g. the demo's D=8): wrapper-side split/merge.
        # TODO(synk): lane-pad D to 128 / fold heads into lanes for lane-dense stores.
        qkv4 = qkv.reshape(B, S, 3, H, D)
        q = qkv4[:, :, 0].transpose(0, 2, 1, 3).reshape(B * H, S, D)
        k = qkv4[:, :, 1].transpose(0, 2, 1, 3).reshape(B * H, S, D)
        v = qkv4[:, :, 2].transpose(0, 2, 1, 3).reshape(B * H, S, D)
        attn = flash_attention(q, k, v, block_q=block_q, block_k=block_k)           # (B*H,S,D)
        attn2d = attn.reshape(B, H, S, D).transpose(0, 2, 1, 3).reshape(B * S, E)

    # 3) Output projection (bf16 matmul, f32 result).
    out = fused_linear(attn2d.astype(jnp.bfloat16), wo_t, bo.astype(jnp.float32),
                       out_dtype=x.dtype)
    return out.reshape(B, S, E)


# ---------------------------------------------------------------------------
# Pure-JAX f32 reference
# ---------------------------------------------------------------------------
def reference_mha(x, wq, wk, wv, wo, bq, bk, bv, bo, num_heads):
    B, S, E = x.shape
    D = E // num_heads
    q = x @ wq.T + bq[0]
    k = x @ wk.T + bk[0]
    v = x @ wv.T + bv[0]

    def split(t):  # (B,S,E) -> (B,H,S,D)
        return t.reshape(B, S, num_heads, D).transpose(0, 2, 1, 3)

    qh, kh, vh = split(q), split(k), split(v)
    i = jnp.arange(S)[:, None]
    j = jnp.arange(S)[None, :]
    mask = jnp.where(j > i, float("-inf"), 0.0).astype(jnp.float32)
    s = jnp.einsum("bhsd,bhtd->bhst", qh, kh) / math.sqrt(D) + mask
    p = jax.nn.softmax(s, axis=-1)
    o = jnp.einsum("bhst,bhtd->bhsd", p, vh).transpose(0, 2, 1, 3).reshape(B, S, E)
    return o @ wo.T + bo[0]


if __name__ == "__main__":
    def run_case(B, S, E, H, key, block_q=256, block_k=256):
        kx, kq, kk, kv, ko, kb = jax.random.split(key, 6)
        bound = 1.0 / math.sqrt(E)
        x = jax.random.normal(kx, (B, S, E), dtype=jnp.float32)
        wq = jax.random.uniform(kq, (E, E), jnp.float32, -bound, bound)
        wk = jax.random.uniform(kk, (E, E), jnp.float32, -bound, bound)
        wv = jax.random.uniform(kv, (E, E), jnp.float32, -bound, bound)
        wo = jax.random.uniform(ko, (E, E), jnp.float32, -bound, bound)
        bq, bk_, bv, bo = [0.01 * jax.random.normal(k_i, (1, E), dtype=jnp.float32)
                           for k_i in jax.random.split(kb, 4)]
        out = multi_head_attention(x, wq, wk, wv, wo, bq, bk_, bv, bo,
                                   num_heads=H, block_q=block_q, block_k=block_k)
        out = jax.block_until_ready(out)
        ref = reference_mha(x, wq, wk, wv, wo, bq, bk_, bv, bo, H)
        assert out.shape == (B, S, E)
        err = float(jnp.max(jnp.abs(out - ref)))
        assert err < 5e-2, err    # bf16 MXU inputs -> looser tolerance than pure f32
        return err

    key = jax.random.PRNGKey(0)
    k1, k2 = jax.random.split(key)
    # Case 1: module-scale demo (D=8) -> fallback (transpose) path.
    run_case(2, 8, 32, 4, k1)
    # Case 2: D=128 -> lane-dense packed path; small blocks exercise interior/straddle/skip.
    run_case(2, 16, 256, 2, k2, block_q=8, block_k=8)

    print("KERNEL_OK")
</pallas_src>

<mosaic_0001>
module attributes {stable_mosaic.version = 11 : i64} {
  func.func @linear_kernel(%arg0: i32, %arg1: i32, %arg2: memref<16x32xbf16, #tpu.memory_space<vmem>>, %arg3: memref<32x96xbf16, #tpu.memory_space<vmem>>, %arg4: memref<1x96xf32, #tpu.memory_space<vmem>>, %arg5: memref<16x96xbf16, #tpu.memory_space<vmem>>) attributes {dimension_semantics = [#tpu.dimension_semantics<parallel>, #tpu.dimension_semantics<parallel>], iteration_bounds = array<i64: 1, 1>, scalar_prefetch = 0 : i64, scratch_operands = 0 : i64, tpu.core_type = #tpu.core_type<tc>, window_params = [{transform_indices = @transform_0, window_bounds = array<i64: 16, 32>}, {transform_indices = @transform_1, window_bounds = array<i64: 32, 96>}, {transform_indices = @transform_2, window_bounds = array<i64: 1, 96>}, {transform_indices = @transform_3, window_bounds = array<i64: 16, 96>}]} {
    %c0 = arith.constant 0 : index
    %c0_0 = arith.constant 0 : index
    %0 = vector.load %arg2[%c0, %c0_0] : memref<16x32xbf16, #tpu.memory_space<vmem>>, vector<16x32xbf16>
    %c0_1 = arith.constant 0 : index
    %c0_2 = arith.constant 0 : index
    %1 = vector.load %arg3[%c0_1, %c0_2] : memref<32x96xbf16, #tpu.memory_space<vmem>>, vector<32x96xbf16>
    %cst = arith.constant dense<0.000000e+00> : vector<16x96xf32>
    %2 = tpu.matmul %0, %1, %cst {dimension_numbers = #tpu.dot_dimension_numbers<[1], [0], [0], [1], [0, 0, 1, 1], [], []>} : vector<16x32xbf16>, vector<32x96xbf16>, vector<16x96xf32> -> vector<16x96xf32>
    %c0_3 = arith.constant 0 : index
    %c0_4 = arith.constant 0 : index
    %3 = vector.load %arg4[%c0_3, %c0_4] : memref<1x96xf32, #tpu.memory_space<vmem>>, vector<1x96xf32>
    %4 = vector.broadcast %3 : vector<1x96xf32> to vector<16x96xf32>
    %5 = arith.addf %2, %4 : vector<16x96xf32>
    %6 = arith.truncf %5 : vector<16x96xf32> to vector<16x96xbf16>
    %c0_5 = arith.constant 0 : index
    %c0_6 = arith.constant 0 : index
    %7 = vector.load %arg5[%c0_5, %c0_6] : memref<16x96xbf16, #tpu.memory_space<vmem>>, vector<16x96xbf16>
    tpu.vector_store %arg5[%c0_5, %c0_6], %6 {strides = array<i32>} : memref<16x96xbf16, #tpu.memory_space<vmem>>, vector<16x96xbf16>,
    return
  }
  func.func @transform_0(%arg0: i32, %arg1: i32) -> (i32, i32) {
    %c0_i32 = arith.constant 0 : i32
    %c0_i32_0 = arith.constant 0 : i32
    return %arg0, %c0_i32 : i32, i32
  }
  func.func @transform_1(%arg0: i32, %arg1: i32) -> (i32, i32) {
    %c0_i32 = arith.constant 0 : i32
    %c0_i32_0 = arith.constant 0 : i32
    return %c0_i32, %arg1 : i32, i32
  }
  func.func @transform_2(%arg0: i32, %arg1: i32) -> (i32, i32) {
    %c0_i32 = arith.constant 0 : i32
    %c0_i32_0 = arith.constant 0 : i32
    return %c0_i32, %arg1 : i32, i32
  }
  func.func @transform_3(%arg0: i32, %arg1: i32) -> (i32, i32) {
    %c0_i32 = arith.constant 0 : i32
    return %arg0, %arg1 : i32, i32
  }
}

</mosaic_0001>

<llo_original>
// kernel: tpu_custom_call.1
$region0: #{tpu_custom_call.1}
  #allocation0 [shape = 'u32[]', space=smem, size = 0x4, offset = 0x4, fixed_abs, tag = 'smem constant byte address 0x4 - core index']
  #allocation1 [shape = 'u32[144,128]{1,0:T(1,128)}', space=vmem, size = 0x12000, scoped, tag = 'internal scratch']
  %s0 = inlined_call_operand.hbm [shape: bf16[16,32], index: 0, kind: input, shape index: {}]
  %s1 = inlined_call_operand.hbm [shape: bf16[32,96], index: 1, kind: input, shape index: {}]
  %s2 = inlined_call_operand.vmem [shape: f32[1,96], index: 2, kind: input, shape index: {}]
  %s3 = inlined_call_operand.hbm [shape: bf16[16,96], index: 3, kind: output, shape index: {}]
  %s4 = sld [smem:[#allocation0]]
  $region30: #{tpu_custom_call.1} parent=0
    _
  %s6 = ssub.s32 1, %s4
  %s7 = scalar_select 0, %s6, %s4
  $region1: #{tpu_custom_call.1} parent=0
    #allocation2 [shape = 'u8[4096]{0}', space=vmem, size = 0x1000, scoped, tag = 'input window, operand 0, single buffered']
    #allocation3 [shape = 's32[1]{0}', space=sflag, size = 0x4, scoped, tag = 'scoped memory for tpu_custom_call.1']
    #allocation4 [shape = 's32[1]{0}', space=sflag, size = 0x4, scoped, tag = 'scoped memory for tpu_custom_call.1']
    #allocation5 [shape = 'u8[8192]{0}', space=vmem, size = 0x2000, scoped, tag = 'input window, operand 1, single buffered']
    #allocation6 [shape = 's32[1]{0}', space=sflag, size = 0x4, scoped, tag = 'scoped memory for tpu_custom_call.1']
    #allocation7 [shape = 'u8[4096]{0}', space=vmem, size = 0x1000, scoped, tag = 'output window, operand 0, single buffered']
    %8 = vsyncpa [#allocation3], 0
    %9 = vsyncpa [#allocation6], 0
    %10 = vsyncpa [#allocation4], 0
    // Predicated region
    $region2: #{tpu_custom_call.1} parent=1 // pred_check
      _
    $region3: #{tpu_custom_call.1} parent=1 // pred_check_branch
      %12 = sbr.rel (0) target = $region5
    $region4: #{tpu_custom_call.1} parent=1 // pred_region
      %s14 = ssub.s32 128, 128
      %15 = vsyncadd [#allocation3], %s14
      %s16 = sshll.u32 [#allocation2], 4
      %s17 = int_to_ptr.vmem [resolvable:$true] %s16
      %22 = dma.hbm_to_vmem [thread:$0]  %s0, 128, %s17, [#allocation3], 64, 64, 4
    $region5: #{tpu_custom_call.1} parent=1 // pred_fallthru
      _
    // Predicated region
    $region6: #{tpu_custom_call.1} parent=1 // pred_check
      _
    $region7: #{tpu_custom_call.1} parent=1 // pred_check_branch
      %24 = sbr.rel (0) target = $region9
    $region8: #{tpu_custom_call.1} parent=1 // pred_region
      %s26 = ssub.s32 256, 256
      %27 = vsyncadd [#allocation6], %s26
      %s28 = sshll.u32 [#allocation5], 4
      %s29 = int_to_ptr.vmem [resolvable:$true] %s28
      %34 = dma.hbm_to_vmem [thread:$0]  %s1, 256, %s29, [#allocation6], 64, 64, 4
    $region9: #{tpu_custom_call.1} parent=1 // pred_fallthru
      _
    // Predicated region
    $region10: #{tpu_custom_call.1} parent=1 // pred_check
      _
    $region11: #{tpu_custom_call.1} parent=1 // pred_check_branch
      %36 = sbr.rel (0) target = $region13
    $region12: #{tpu_custom_call.1} parent=1 // pred_region
      _
    $region13: #{tpu_custom_call.1} parent=1 // pred_fallthru
      _
    // Predicated region
    $region14: #{tpu_custom_call.1} parent=1 // pred_check
      _
    $region15: #{tpu_custom_call.1} parent=1 // pred_check_branch
      %38 = sbr.rel (0) target = $region17
    $region16: #{tpu_custom_call.1} parent=1 // pred_region
      %39 = dma.done [#allocation3], 128
    $region17: #{tpu_custom_call.1} parent=1 // pred_fallthru
      _
    // Predicated region
    $region18: #{tpu_custom_call.1} parent=1 // pred_check
      _
    $region19: #{tpu_custom_call.1} parent=1 // pred_check_branch
      %41 = sbr.rel (0) target = $region21
    $region20: #{tpu_custom_call.1} parent=1 // pred_region
      %42 = dma.done [#allocation6], 256
    $region21: #{tpu_custom_call.1} parent=1 // pred_fallthru
      _
    %v44 = vld [vmem:[#allocation2] sm:$0xf]
    %v45 = vld [vmem:[#allocation2 + $0x4] sm:$0xf]
    %v46 = vld [vmem:[#allocation5] sm:$0xf]
    %v47 = vld [vmem:[#allocation5 + $0x4] sm:$0xf]
    %v48 = vld [vmem:[#allocation5 + $0x8] sm:$0xf]
    %v49 = vld [vmem:[#allocation5 + $0xc] sm:$0xf]
    %v50 = vld [vmem:[%s2] sm:$0x1]
    %v52 = vlaneseq
    %v53 = vshrl.u32 %v52, 7
    %v54 = vsub.s32 0, %v53
    %v55 = vrot.slane %v50, %v54
    %v59 = vunpack.c.l.b16 %v44
    %v60 = vunpack.c.l.b16 %v45
    %v61 = vpack.c.b16 %v60, %v59
    %v66 = vunpack.c.l.b16 %v46
    %v67 = vunpack.c.l.b16 %v47
    %v68 = vunpack.c.l.b16 %v48
    %v69 = vunpack.c.l.b16 %v49
    %v70 = vpack.c.b16 %v67, %v66
    %v71 = vpack.c.b16 %v69, %v68
    %vm74 = vcmask 261120
    %v76 = vsel %vm74, %v61, 0
    %78 = vmatprep.subr.bf16.mxu0 0
    %79 = vmatpush1.bf16.msra.mxu0 %v70
    %80 = vmatprep.subr.bf16.mxu0 0
    %81 = vmatpush1.bf16.msra.mxu0 %v71
    %82 = vmatprep.subr.bf16.mxu0 0
    %83 = vmatpush1.bf16.msra.mxu0 0
    %84 = vmatprep.subr.bf16.mxu0 0
    %85 = vmatpush1.bf16.msra.mxu0 0
    %86 = vmatprep.subr.bf16.mxu0 0
    %87 = vmatpush1.bf16.msra.mxu0 0
    %88 = vmatprep.subr.bf16.mxu0 0
    %89 = vmatpush1.bf16.msra.mxu0 0
    %90 = vmatprep.subr.bf16.mxu0 0
    %91 = vmatpush1.bf16.msra.mxu0 0
    %92 = vmatprep.subr.bf16.mxu0 0
    %93 = vmatpush1.bf16.msra.mxu0 0
    %94 = vmatprep.subr.bf16.mxu0 0
    %95 = vmatpush1.bf16.msra.mxu0 0
    %96 = vmatprep.subr.bf16.mxu0 0
    %97 = vmatpush1.bf16.msra.mxu0 0
    %98 = vmatprep.subr.bf16.mxu0 0
    %99 = vmatpush1.bf16.msra.mxu0 0
    %100 = vmatprep.subr.bf16.mxu0 0
    %101 = vmatpush1.bf16.msra.mxu0 0
    %102 = vmatprep.subr.bf16.mxu0 0
    %103 = vmatpush1.bf16.msra.mxu0 0
    %104 = vmatprep.subr.bf16.mxu0 0
    %105 = vmatpush1.bf16.msra.mxu0 0
    %106 = vmatprep.subr.bf16.mxu0 0
    %107 = vmatpush1.bf16.msra.mxu0 0
    %108 = vmatprep.subr.bf16.mxu0 0
    %109 = vmatpush1.bf16.msra.mxu0 0
    %110 = vmatprep.mubr.bf16.mxu0 0
    %111 = vmatmul.mubr.bf16.gmra.mrb[0].mxu0 %v76
    %v112 = vpop.f32.mrb[0].mxu0
    %v113 = vadd.f32 %v55, %v112
    %v114 = vpop.f32.mrb[0].mxu0
    %v115 = vpop.f32.mrb[0].mxu0
    %v116 = vadd.f32 %v55, %v115
    %v117 = vpop.f32.mrb[0].mxu0
    %118 = vdwg.mxu0
    %v119 = vpack.c.bf16 %v116, %v113
    %v121 = vunpack.c.l.b16 %v119
    %v122 = vunpack.c.h.b16 %v119
    %v123 = vpack.c.b16 %v121, %v121
    %v124 = vpack.c.b16 %v122, %v122
    %vm127 = vcmask 781312
    %128 = vst.msk [vmem:[#allocation7] sm:$0xf] %vm127, %v123
    %129 = vst.msk [vmem:[#allocation7 + $0x4] sm:$0xf] %vm127, %v124
    // Predicated region
    $region22: #{tpu_custom_call.1} parent=1 // pred_check
      _
    $region23: #{tpu_custom_call.1} parent=1 // pred_check_branch
      %131 = sbr.rel (0) target = $region25
    $region24: #{tpu_custom_call.1} parent=1 // pred_region
      %s133 = ssub.s32 128, 128
      %134 = vsyncadd [#allocation4], %s133
      %s135 = sshll.u32 [#allocation7], 4
      %s136 = int_to_ptr.vmem [resolvable:$true] %s135
      %141 = dma.vmem_to_hbm [thread:$0]  %s136, 128, %s3, [#allocation4], 64, 64, 4
    $region25: #{tpu_custom_call.1} parent=1 // pred_fallthru
      _
    // Predicated region
    $region26: #{tpu_custom_call.1} parent=1 // pred_check
      _
    $region27: #{tpu_custom_call.1} parent=1 // pred_check_branch
      %143 = sbr.rel (0) target = $region29
    $region28: #{tpu_custom_call.1} parent=1 // pred_region
      %144 = dma.done [#allocation4], 128
    $region29: #{tpu_custom_call.1} parent=1 // pred_fallthru
      _
    %145 = vsyncpa [#allocation3], 1
    %146 = vsyncpa [#allocation6], 1
    %147 = vsyncpa [#allocation4], 1

</llo_original>
